<compile_context>
chip_gen: v7x
topology: tpu7x:2x2x1
jax: 0.10.0
libtpu: 0.0.40
codegen_flags: <defaults>
</compile_context>

<pallas_src>
import math
from functools import partial

import jax
import jax.numpy as jnp
from jax import lax
from jax.experimental import pallas as pl
from jax.experimental.pallas import tpu as pltpu


# ------------------------------ Pallas kernel ------------------------------ #

def _cnn_kernel(x_ref, w1_ref, b1_ref, w2_ref, b2_ref, wfc_ref, bfc_ref,
                o_ref, s1_ref, s2_ref, *, L):
    """Fused CNN forward for one block of BB batch elements (stacked on sublanes).

    x_ref   : (BB*L, Cin)      input rows, channels last, row = b*L + l
    w1_ref  : (3*Cin, H)       conv1 weight, tap-major im2col layout, bf16
    b1_ref  : (1, H)           conv1 bias, f32
    w2_ref  : (3*H, 2H)        conv2 weight, bf16
    b2_ref  : (1, 2H)          conv2 bias, f32
    wfc_ref : (L4*2H, O_pad)   fc weight, l-major channels-last order, bf16
    bfc_ref : (1, O_pad)       fc bias (zero-padded), f32
    o_ref   : (BB, O_pad)      lane-dense output tile, f32
    s1_ref  : VMEM (BB*L, H)   conv1+relu output (pooling staging)
    s2_ref  : VMEM (BB*L//2, 2H) conv2+relu output (pooling staging)
    """
    M = x_ref.shape[0]
    BB = M // L
    L2, L4 = L // 2, L // 4
    M2 = BB * L2

    def taps(v, period):
        """Lane-concat [v[l-1], v[l], v[l+1]] per element (zero at element edges)."""
        rows = v.shape[0]
        pos = lax.broadcasted_iota(jnp.int32, (rows, 1), 0) % period
        prev = jnp.where(pos == 0, 0.0, pltpu.roll(v, shift=1, axis=0))
        nxt = jnp.where(pos == period - 1, 0.0,
                        pltpu.roll(v, shift=rows - 1, axis=0))
        return jnp.concatenate([prev, v, nxt], axis=-1).astype(jnp.bfloat16)

    # ---- conv1 (single im2col matmul) + ReLU ----
    x = x_ref[...]                                                # (M, Cin) f32
    h1 = jnp.dot(taps(x, L), w1_ref[...],
                 preferred_element_type=jnp.float32)              # (M, H) f32
    s1_ref[...] = jnp.maximum(h1 + b1_ref[...], 0.0)

    # ---- MaxPool1d(kernel=2, stride=2) ----
    p1 = jnp.maximum(s1_ref[pl.ds(0, M2, stride=2), :],
                     s1_ref[pl.ds(1, M2, stride=2), :])           # (BB*L2, H)

    # ---- conv2 (single im2col matmul) + ReLU ----
    h2 = jnp.dot(taps(p1, L2), w2_ref[...],
                 preferred_element_type=jnp.float32)              # (M2, 2H) f32
    s2_ref[...] = jnp.maximum(h2 + b2_ref[...], 0.0)

    # ---- MaxPool1d(2, 2) fused with channels-last flatten ----
    # fc_in[b, l*2H + c] = max(s2[b*L2 + 2l, c], s2[b*L2 + 2l + 1, c])
    blocks = [
        jnp.maximum(s2_ref[pl.ds(2 * l, BB, stride=L2), :],
                    s2_ref[pl.ds(2 * l + 1, BB, stride=L2), :])
        for l in range(L4)
    ]
    fc_in = jnp.concatenate(blocks, axis=-1).astype(jnp.bfloat16)  # (BB, L4*2H)

    # ---- Dropout(0.2): identity in eval mode ----
    # TODO(synk): training-mode dropout (random mask + 1/(1-p) scaling) not implemented.

    # ---- fc: one matmul, lane-dense (O padded to 128) output tile ----
    out = jnp.dot(fc_in, wfc_ref[...], preferred_element_type=jnp.float32)
    o_ref[...] = out + bfc_ref[...]                                # (BB, O_pad)


# ------------------------------ JAX wrappers ------------------------------- #

def _pick_block_batch(B, L):
    """Largest divisor of B whose stacked row count stays <= ~256 sublanes."""
    best = 1
    for cand in range(1, B + 1):
        if B % cand == 0 and cand * L <= max(L, 256):
            best = cand
    return best


@jax.jit
def cnn_forward(input_seq, params):
    """Equivalent of CNN.forward(input_seq) in eval mode.  input_seq: (B, L, Cin)."""
    x = input_seq.astype(jnp.float32)
    B, L, Cin = x.shape
    H = params["w1"].shape[0]
    H2 = params["w2"].shape[0]
    O = params["wfc"].shape[0]
    L4 = L // 4
    O_pad = ((O + 127) // 128) * 128

    BB = _pick_block_batch(B, L)
    grid = (B // BB,)

    # --- re-layout PyTorch-format parameters for the kernel (pure JAX, outside kernel) ---
    # conv weights: (Cout, Cin, 3) -> tap-major im2col (3*Cin, Cout), bf16 MXU operands.
    w1k = jnp.transpose(params["w1"], (2, 1, 0)).reshape(3 * Cin, H).astype(jnp.bfloat16)
    w2k = jnp.transpose(params["w2"], (2, 1, 0)).reshape(3 * H, H2).astype(jnp.bfloat16)
    b1 = params["b1"][None, :].astype(jnp.float32)
    b2 = params["b2"][None, :].astype(jnp.float32)
    # torch flattens (B, 2H, L/4) as j = c*L4 + l; the kernel flattens l-major
    # channels-last (j' = l*2H + c), so permute, then pad O to a lane-dense 128.
    wfck = jnp.transpose(params["wfc"].reshape(O, H2, L4), (2, 1, 0)).reshape(L4 * H2, O)
    wfck = jnp.pad(wfck, ((0, 0), (0, O_pad - O))).astype(jnp.bfloat16)
    bfc = jnp.pad(params["bfc"], (0, O_pad - O))[None, :].astype(jnp.float32)

    x2 = x.reshape(B * L, Cin)            # batch stacked along rows (sublanes)

    out = pl.pallas_call(
        partial(_cnn_kernel, L=L),
        out_shape=jax.ShapeDtypeStruct((B, O_pad), jnp.float32),
        grid=grid,
        in_specs=[
            pl.BlockSpec((BB * L, Cin), lambda g: (g, 0)),
            pl.BlockSpec((3 * Cin, H), lambda g: (0, 0)),
            pl.BlockSpec((1, H), lambda g: (0, 0)),
            pl.BlockSpec((3 * H, H2), lambda g: (0, 0)),
            pl.BlockSpec((1, H2), lambda g: (0, 0)),
            pl.BlockSpec((L4 * H2, O_pad), lambda g: (0, 0)),
            pl.BlockSpec((1, O_pad), lambda g: (0, 0)),
        ],
        out_specs=pl.BlockSpec((BB, O_pad), lambda g: (g, 0)),
        scratch_shapes=[
            pltpu.VMEM((BB * L, H), jnp.float32),
            pltpu.VMEM((BB * L // 2, H2), jnp.float32),
        ],
        compiler_params=pltpu.CompilerParams(
            dimension_semantics=("parallel",)),
    )(x2, w1k, b1, w2k, b2, wfck, bfc)
    return out[:, :O]


def init_params(key, input_size, hidden_size, sequence_length, output_size):
    """PyTorch-style U(-sqrt(k), sqrt(k)) init, PyTorch weight layouts."""
    H, H2 = hidden_size, 2 * hidden_size
    conv_out = H2 * (sequence_length // 4)
    k1, k2, k3, k4, k5, k6 = jax.random.split(key, 6)
    kc1 = 1.0 / math.sqrt(input_size * 3)
    kc2 = 1.0 / math.sqrt(H * 3)
    kf = 1.0 / math.sqrt(conv_out)
    return {
        "w1": jax.random.uniform(k1, (H, input_size, 3), jnp.float32, -kc1, kc1),
        "b1": jax.random.uniform(k2, (H,), jnp.float32, -kc1, kc1),
        "w2": jax.random.uniform(k3, (H2, H, 3), jnp.float32, -kc2, kc2),
        "b2": jax.random.uniform(k4, (H2,), jnp.float32, -kc2, kc2),
        "wfc": jax.random.uniform(k5, (output_size, conv_out), jnp.float32, -kf, kf),
        "bfc": jax.random.uniform(k6, (output_size,), jnp.float32, -kf, kf),
    }


def cnn_reference(x, params):
    """Pure-JAX reference mirroring the PyTorch forward (for validation)."""
    xt = jnp.transpose(x, (0, 2, 1))                            # (B, Cin, L)
    y = jax.lax.conv_general_dilated(
        xt, params["w1"], window_strides=(1,), padding=((1, 1),),
        dimension_numbers=("NCH", "OIH", "NCH"))
    y = jax.nn.relu(y + params["b1"][None, :, None])
    y = jax.lax.reduce_window(y, -jnp.inf, jax.lax.max, (1, 1, 2), (1, 1, 2), "VALID")
    y = jax.lax.conv_general_dilated(
        y, params["w2"], window_strides=(1,), padding=((1, 1),),
        dimension_numbers=("NCH", "OIH", "NCH"))
    y = jax.nn.relu(y + params["b2"][None, :, None])
    y = jax.lax.reduce_window(y, -jnp.inf, jax.lax.max, (1, 1, 2), (1, 1, 2), "VALID")
    flat = y.reshape(y.shape[0], -1)                            # torch .view order
    return flat @ params["wfc"].T + params["bfc"][None, :]


# ---------------------------------- main ----------------------------------- #

if __name__ == "__main__":
    input_size = 8
    hidden_size = 32
    num_layers = 1            # present in the PyTorch ctor, unused by forward
    sequence_length = 16
    output_size = 4
    batch_size = 2

    root = jax.random.PRNGKey(0)
    k_params, k_input = jax.random.split(root)

    params = init_params(k_params, input_size, hidden_size, sequence_length, output_size)
    x = jax.random.normal(k_input, (batch_size, sequence_length, input_size), jnp.float32)

    out = cnn_forward(x, params)
    jax.block_until_ready(out)
    assert out.shape == (batch_size, output_size), out.shape

    ref = cnn_reference(x, params)
    # bf16 MXU operands (f32 accumulation) -> small deviation from the f32 reference.
    assert jnp.allclose(out, ref, atol=2e-2, rtol=2e-2), (out, ref)

    print("KERNEL_OK")
</pallas_src>

<mosaic_0001>
module attributes {stable_mosaic.version = 11 : i64} {
  func.func @_cnn_kernel(%arg0: i32, %arg1: memref<32x8xf32, #tpu.memory_space<vmem>>, %arg2: memref<24x32xbf16, #tpu.memory_space<vmem>>, %arg3: memref<1x32xf32, #tpu.memory_space<vmem>>, %arg4: memref<96x64xbf16, #tpu.memory_space<vmem>>, %arg5: memref<1x64xf32, #tpu.memory_space<vmem>>, %arg6: memref<256x128xbf16, #tpu.memory_space<vmem>>, %arg7: memref<1x128xf32, #tpu.memory_space<vmem>>, %arg8: memref<2x128xf32, #tpu.memory_space<vmem>>, %arg9: memref<32x32xf32, #tpu.memory_space<vmem>>, %arg10: memref<16x64xf32, #tpu.memory_space<vmem>>) attributes {dimension_semantics = [#tpu.dimension_semantics<parallel>], iteration_bounds = array<i64: 1>, scalar_prefetch = 0 : i64, scratch_operands = 2 : i64, tpu.core_type = #tpu.core_type<tc>, window_params = [{transform_indices = @transform_0, window_bounds = array<i64: 32, 8>}, {pipeline_mode = #tpu.pipeline_mode<synchronous>, transform_indices = @transform_1, window_bounds = array<i64: 24, 32>}, {pipeline_mode = #tpu.pipeline_mode<synchronous>, transform_indices = @transform_2, window_bounds = array<i64: 1, 32>}, {pipeline_mode = #tpu.pipeline_mode<synchronous>, transform_indices = @transform_3, window_bounds = array<i64: 96, 64>}, {pipeline_mode = #tpu.pipeline_mode<synchronous>, transform_indices = @transform_4, window_bounds = array<i64: 1, 64>}, {pipeline_mode = #tpu.pipeline_mode<synchronous>, transform_indices = @transform_5, window_bounds = array<i64: 256, 128>}, {pipeline_mode = #tpu.pipeline_mode<synchronous>, transform_indices = @transform_6, window_bounds = array<i64: 1, 128>}, {transform_indices = @transform_7, window_bounds = array<i64: 2, 128>}]} {
    %c0 = arith.constant 0 : index
    %c0_0 = arith.constant 0 : index
    %0 = vector.load %arg1[%c0, %c0_0] : memref<32x8xf32, #tpu.memory_space<vmem>>, vector<32x8xf32>
    %1 = tpu.iota {dimensions = array<i32: 0>} : vector<32x1xi32>
    %c16_i32 = arith.constant 16 : i32
    %c0_i32 = arith.constant 0 : i32
    %2 = arith.cmpi eq, %c16_i32, %c0_i32 : i32
    %c1_i32 = arith.constant 1 : i32
    %3 = arith.select %2, %c1_i32, %c16_i32 : i32
    %4 = vector.broadcast %3 : i32 to vector<32x1xi32>
    %5 = arith.remsi %1, %4 : vector<32x1xi32>
    %c0_i32_1 = arith.constant 0 : i32
    %6 = vector.broadcast %c0_i32_1 : i32 to vector<32x1xi32>
    %7 = arith.cmpi ne, %5, %6 : vector<32x1xi32>
    %c0_i32_2 = arith.constant 0 : i32
    %8 = vector.broadcast %c0_i32_2 : i32 to vector<32x1xi32>
    %9 = arith.cmpi slt, %5, %8 : vector<32x1xi32>
    %c0_i32_3 = arith.constant 0 : i32
    %10 = arith.cmpi slt, %3, %c0_i32_3 : i32
    %11 = vector.broadcast %10 : i1 to vector<32x1xi1>
    %12 = vector.broadcast %11 : vector<32x1xi1> to vector<32x1xi1>
    %13 = arith.xori %9, %12 : vector<32x1xi1>
    %14 = arith.andi %13, %7 : vector<32x1xi1>
    %15 = vector.broadcast %3 : i32 to vector<32x1xi32>
    %16 = arith.addi %5, %15 : vector<32x1xi32>
    %17 = arith.select %14, %16, %5 : vector<32x1xi1>, vector<32x1xi32>
    %c0_i32_4 = arith.constant 0 : i32
    %18 = vector.broadcast %c0_i32_4 : i32 to vector<32x1xi32>
    %19 = arith.cmpi eq, %17, %18 : vector<32x1xi32>
    %c1_i32_5 = arith.constant 1 : i32
    %20 = tpu.dynamic_rotate %0 by %c1_i32_5 dim 0 : vector<32x8xf32>, i32 -> vector<32x8xf32>
    %cst = arith.constant 0.000000e+00 : f32
    %21 = vector.shape_cast %19 : vector<32x1xi1> to vector<32x1xi1>
    %22 = vector.broadcast %21 : vector<32x1xi1> to vector<32x8xi1>
    %23 = vector.broadcast %cst : f32 to vector<32x8xf32>
    %24 = arith.select %22, %23, %20 : vector<32x8xi1>, vector<32x8xf32>
    %c15_i32 = arith.constant 15 : i32
    %25 = vector.broadcast %c15_i32 : i32 to vector<32x1xi32>
    %26 = arith.cmpi eq, %17, %25 : vector<32x1xi32>
    %c31_i32 = arith.constant 31 : i32
    %27 = tpu.dynamic_rotate %0 by %c31_i32 dim 0 : vector<32x8xf32>, i32 -> vector<32x8xf32>
    %cst_6 = arith.constant 0.000000e+00 : f32
    %28 = vector.shape_cast %26 : vector<32x1xi1> to vector<32x1xi1>
    %29 = vector.broadcast %28 : vector<32x1xi1> to vector<32x8xi1>
    %30 = vector.broadcast %cst_6 : f32 to vector<32x8xf32>
    %31 = arith.select %29, %30, %27 : vector<32x8xi1>, vector<32x8xf32>
    %32 = tpu.concatenate %24, %0, %31 in 1 : vector<32x8xf32>, vector<32x8xf32>, vector<32x8xf32> -> vector<32x24xf32>
    %33 = arith.truncf %32 : vector<32x24xf32> to vector<32x24xbf16>
    %c0_7 = arith.constant 0 : index
    %c0_8 = arith.constant 0 : index
    %34 = vector.load %arg2[%c0_7, %c0_8] : memref<24x32xbf16, #tpu.memory_space<vmem>>, vector<24x32xbf16>
    %cst_9 = arith.constant dense<0.000000e+00> : vector<32x32xf32>
    %35 = tpu.matmul %33, %34, %cst_9 {dimension_numbers = #tpu.dot_dimension_numbers<[1], [0], [0], [1], [0, 0, 1, 1], [], []>} : vector<32x24xbf16>, vector<24x32xbf16>, vector<32x32xf32> -> vector<32x32xf32>
    %c0_10 = arith.constant 0 : index
    %c0_11 = arith.constant 0 : index
    %36 = vector.load %arg3[%c0_10, %c0_11] : memref<1x32xf32, #tpu.memory_space<vmem>>, vector<1x32xf32>
    %37 = vector.broadcast %36 : vector<1x32xf32> to vector<32x32xf32>
    %38 = arith.addf %35, %37 : vector<32x32xf32>
    %cst_12 = arith.constant 0.000000e+00 : f32
    %39 = vector.broadcast %cst_12 : f32 to vector<32x32xf32>
    %40 = arith.maximumf %38, %39 : vector<32x32xf32>
    %c0_13 = arith.constant 0 : index
    %c0_14 = arith.constant 0 : index
    %41 = vector.load %arg9[%c0_13, %c0_14] : memref<32x32xf32, #tpu.memory_space<vmem>>, vector<32x32xf32>
    tpu.vector_store %arg9[%c0_13, %c0_14], %40 {strides = array<i32>} : memref<32x32xf32, #tpu.memory_space<vmem>>, vector<32x32xf32>,
    %c0_15 = arith.constant 0 : index
    %c0_16 = arith.constant 0 : index
    %42 = tpu.strided_load %arg9[%c0_15, %c0_16] {strides = array<i32: 2, 1>} : memref<32x32xf32, #tpu.memory_space<vmem>>, vector<16x32xf32>
    %c1 = arith.constant 1 : index
    %c0_17 = arith.constant 0 : index
    %43 = tpu.strided_load %arg9[%c1, %c0_17] {strides = array<i32: 2, 1>} : memref<32x32xf32, #tpu.memory_space<vmem>>, vector<16x32xf32>
    %44 = arith.maximumf %42, %43 : vector<16x32xf32>
    %45 = tpu.iota {dimensions = array<i32: 0>} : vector<16x1xi32>
    %c8_i32 = arith.constant 8 : i32
    %c0_i32_18 = arith.constant 0 : i32
    %46 = arith.cmpi eq, %c8_i32, %c0_i32_18 : i32
    %c1_i32_19 = arith.constant 1 : i32
    %47 = arith.select %46, %c1_i32_19, %c8_i32 : i32
    %48 = vector.broadcast %47 : i32 to vector<16x1xi32>
    %49 = arith.remsi %45, %48 : vector<16x1xi32>
    %c0_i32_20 = arith.constant 0 : i32
    %50 = vector.broadcast %c0_i32_20 : i32 to vector<16x1xi32>
    %51 = arith.cmpi ne, %49, %50 : vector<16x1xi32>
    %c0_i32_21 = arith.constant 0 : i32
    %52 = vector.broadcast %c0_i32_21 : i32 to vector<16x1xi32>
    %53 = arith.cmpi slt, %49, %52 : vector<16x1xi32>
    %c0_i32_22 = arith.constant 0 : i32
    %54 = arith.cmpi slt, %47, %c0_i32_22 : i32
    %55 = vector.broadcast %54 : i1 to vector<16x1xi1>
    %56 = vector.broadcast %55 : vector<16x1xi1> to vector<16x1xi1>
    %57 = arith.xori %53, %56 : vector<16x1xi1>
    %58 = arith.andi %57, %51 : vector<16x1xi1>
    %59 = vector.broadcast %47 : i32 to vector<16x1xi32>
    %60 = arith.addi %49, %59 : vector<16x1xi32>
    %61 = arith.select %58, %60, %49 : vector<16x1xi1>, vector<16x1xi32>
    %c0_i32_23 = arith.constant 0 : i32
    %62 = vector.broadcast %c0_i32_23 : i32 to vector<16x1xi32>
    %63 = arith.cmpi eq, %61, %62 : vector<16x1xi32>
    %c1_i32_24 = arith.constant 1 : i32
    %64 = tpu.dynamic_rotate %44 by %c1_i32_24 dim 0 : vector<16x32xf32>, i32 -> vector<16x32xf32>
    %cst_25 = arith.constant 0.000000e+00 : f32
    %65 = vector.shape_cast %63 : vector<16x1xi1> to vector<16x1xi1>
    %66 = vector.broadcast %65 : vector<16x1xi1> to vector<16x32xi1>
    %67 = vector.broadcast %cst_25 : f32 to vector<16x32xf32>
    %68 = arith.select %66, %67, %64 : vector<16x32xi1>, vector<16x32xf32>
    %c7_i32 = arith.constant 7 : i32
    %69 = vector.broadcast %c7_i32 : i32 to vector<16x1xi32>
    %70 = arith.cmpi eq, %61, %69 : vector<16x1xi32>
    %c15_i32_26 = arith.constant 15 : i32
    %71 = tpu.dynamic_rotate %44 by %c15_i32_26 dim 0 : vector<16x32xf32>, i32 -> vector<16x32xf32>
    %cst_27 = arith.constant 0.000000e+00 : f32
    %72 = vector.shape_cast %70 : vector<16x1xi1> to vector<16x1xi1>
    %73 = vector.broadcast %72 : vector<16x1xi1> to vector<16x32xi1>
    %74 = vector.broadcast %cst_27 : f32 to vector<16x32xf32>
    %75 = arith.select %73, %74, %71 : vector<16x32xi1>, vector<16x32xf32>
    %76 = tpu.concatenate %68, %44, %75 in 1 : vector<16x32xf32>, vector<16x32xf32>, vector<16x32xf32> -> vector<16x96xf32>
    %77 = arith.truncf %76 : vector<16x96xf32> to vector<16x96xbf16>
    %c0_28 = arith.constant 0 : index
    %c0_29 = arith.constant 0 : index
    %78 = vector.load %arg4[%c0_28, %c0_29] : memref<96x64xbf16, #tpu.memory_space<vmem>>, vector<96x64xbf16>
    %cst_30 = arith.constant dense<0.000000e+00> : vector<16x64xf32>
    %79 = tpu.matmul %77, %78, %cst_30 {dimension_numbers = #tpu.dot_dimension_numbers<[1], [0], [0], [1], [0, 0, 1, 1], [], []>} : vector<16x96xbf16>, vector<96x64xbf16>, vector<16x64xf32> -> vector<16x64xf32>
    %c0_31 = arith.constant 0 : index
    %c0_32 = arith.constant 0 : index
    %80 = vector.load %arg5[%c0_31, %c0_32] : memref<1x64xf32, #tpu.memory_space<vmem>>, vector<1x64xf32>
    %81 = vector.broadcast %80 : vector<1x64xf32> to vector<16x64xf32>
    %82 = arith.addf %79, %81 : vector<16x64xf32>
    %cst_33 = arith.constant 0.000000e+00 : f32
    %83 = vector.broadcast %cst_33 : f32 to vector<16x64xf32>
    %84 = arith.maximumf %82, %83 : vector<16x64xf32>
    %c0_34 = arith.constant 0 : index
    %c0_35 = arith.constant 0 : index
    %85 = vector.load %arg10[%c0_34, %c0_35] : memref<16x64xf32, #tpu.memory_space<vmem>>, vector<16x64xf32>
    tpu.vector_store %arg10[%c0_34, %c0_35], %84 {strides = array<i32>} : memref<16x64xf32, #tpu.memory_space<vmem>>, vector<16x64xf32>,
    %c0_36 = arith.constant 0 : index
    %c0_37 = arith.constant 0 : index
    %86 = tpu.strided_load %arg10[%c0_36, %c0_37] {strides = array<i32: 8, 1>} : memref<16x64xf32, #tpu.memory_space<vmem>>, vector<2x64xf32>
    %c1_38 = arith.constant 1 : index
    %c0_39 = arith.constant 0 : index
    %87 = tpu.strided_load %arg10[%c1_38, %c0_39] {strides = array<i32: 8, 1>} : memref<16x64xf32, #tpu.memory_space<vmem>>, vector<2x64xf32>
    %88 = arith.maximumf %86, %87 : vector<2x64xf32>
    %c2 = arith.constant 2 : index
    %c0_40 = arith.constant 0 : index
    %89 = tpu.strided_load %arg10[%c2, %c0_40] {strides = array<i32: 8, 1>} : memref<16x64xf32, #tpu.memory_space<vmem>>, vector<2x64xf32>
    %c3 = arith.constant 3 : index
    %c0_41 = arith.constant 0 : index
    %90 = tpu.strided_load %arg10[%c3, %c0_41] {strides = array<i32: 8, 1>} : memref<16x64xf32, #tpu.memory_space<vmem>>, vector<2x64xf32>
    %91 = arith.maximumf %89, %90 : vector<2x64xf32>
    %c4 = arith.constant 4 : index
    %c0_42 = arith.constant 0 : index
    %92 = tpu.strided_load %arg10[%c4, %c0_42] {strides = array<i32: 8, 1>} : memref<16x64xf32, #tpu.memory_space<vmem>>, vector<2x64xf32>
    %c5 = arith.constant 5 : index
    %c0_43 = arith.constant 0 : index
    %93 = tpu.strided_load %arg10[%c5, %c0_43] {strides = array<i32: 8, 1>} : memref<16x64xf32, #tpu.memory_space<vmem>>, vector<2x64xf32>
    %94 = arith.maximumf %92, %93 : vector<2x64xf32>
    %c6 = arith.constant 6 : index
    %c0_44 = arith.constant 0 : index
    %95 = tpu.strided_load %arg10[%c6, %c0_44] {strides = array<i32: 8, 1>} : memref<16x64xf32, #tpu.memory_space<vmem>>, vector<2x64xf32>
    %c7 = arith.constant 7 : index
    %c0_45 = arith.constant 0 : index
    %96 = tpu.strided_load %arg10[%c7, %c0_45] {strides = array<i32: 8, 1>} : memref<16x64xf32, #tpu.memory_space<vmem>>, vector<2x64xf32>
    %97 = arith.maximumf %95, %96 : vector<2x64xf32>
    %98 = tpu.concatenate %88, %91, %94, %97 in 1 : vector<2x64xf32>, vector<2x64xf32>, vector<2x64xf32>, vector<2x64xf32> -> vector<2x256xf32>
    %99 = arith.truncf %98 : vector<2x256xf32> to vector<2x256xbf16>
    %c0_46 = arith.constant 0 : index
    %c0_47 = arith.constant 0 : index
    %100 = vector.load %arg6[%c0_46, %c0_47] : memref<256x128xbf16, #tpu.memory_space<vmem>>, vector<256x128xbf16>
    %cst_48 = arith.constant dense<0.000000e+00> : vector<2x128xf32>
    %101 = tpu.matmul %99, %100, %cst_48 {dimension_numbers = #tpu.dot_dimension_numbers<[1], [0], [0], [1], [0, 0, 1, 1], [], []>} : vector<2x256xbf16>, vector<256x128xbf16>, vector<2x128xf32> -> vector<2x128xf32>
    %c0_49 = arith.constant 0 : index
    %c0_50 = arith.constant 0 : index
    %102 = vector.load %arg7[%c0_49, %c0_50] : memref<1x128xf32, #tpu.memory_space<vmem>>, vector<1x128xf32>
    %103 = vector.broadcast %102 : vector<1x128xf32> to vector<2x128xf32>
    %104 = arith.addf %101, %103 : vector<2x128xf32>
    %c0_51 = arith.constant 0 : index
    %c0_52 = arith.constant 0 : index
    %105 = vector.load %arg8[%c0_51, %c0_52] : memref<2x128xf32, #tpu.memory_space<vmem>>, vector<2x128xf32>
    tpu.vector_store %arg8[%c0_51, %c0_52], %104 {strides = array<i32>} : memref<2x128xf32, #tpu.memory_space<vmem>>, vector<2x128xf32>,
    return
  }
  func.func @transform_0(%arg0: i32) -> (i32, i32) {
    %c0_i32 = arith.constant 0 : i32
    %c0_i32_0 = arith.constant 0 : i32
    return %arg0, %c0_i32 : i32, i32
  }
  func.func @transform_1(%arg0: i32) -> (i32, i32) {
    %c0_i32 = arith.constant 0 : i32
    %c0_i32_0 = arith.constant 0 : i32
    %c0_i32_1 = arith.constant 0 : i32
    return %c0_i32, %c0_i32_0 : i32, i32
  }
  func.func @transform_2(%arg0: i32) -> (i32, i32) {
    %c0_i32 = arith.constant 0 : i32
    %c0_i32_0 = arith.constant 0 : i32
    %c0_i32_1 = arith.constant 0 : i32
    return %c0_i32, %c0_i32_0 : i32, i32
  }
  func.func @transform_3(%arg0: i32) -> (i32, i32) {
    %c0_i32 = arith.constant 0 : i32
    %c0_i32_0 = arith.constant 0 : i32
    %c0_i32_1 = arith.constant 0 : i32
    return %c0_i32, %c0_i32_0 : i32, i32
  }
  func.func @transform_4(%arg0: i32) -> (i32, i32) {
    %c0_i32 = arith.constant 0 : i32
    %c0_i32_0 = arith.constant 0 : i32
    %c0_i32_1 = arith.constant 0 : i32
    return %c0_i32, %c0_i32_0 : i32, i32
  }
  func.func @transform_5(%arg0: i32) -> (i32, i32) {
    %c0_i32 = arith.constant 0 : i32
    %c0_i32_0 = arith.constant 0 : i32
    %c0_i32_1 = arith.constant 0 : i32
    return %c0_i32, %c0_i32_0 : i32, i32
  }
  func.func @transform_6(%arg0: i32) -> (i32, i32) {
    %c0_i32 = arith.constant 0 : i32
    %c0_i32_0 = arith.constant 0 : i32
    %c0_i32_1 = arith.constant 0 : i32
    return %c0_i32, %c0_i32_0 : i32, i32
  }
  func.func @transform_7(%arg0: i32) -> (i32, i32) {
    %c0_i32 = arith.constant 0 : i32
    %c0_i32_0 = arith.constant 0 : i32
    return %arg0, %c0_i32 : i32, i32
  }
}

</mosaic_0001>

<llo_original>
// kernel: cnn_forward.1
$region0: #{cnn_forward.1}
  #allocation0 [shape = 'u32[]', space=smem, size = 0x4, offset = 0x4, fixed_abs, tag = 'smem constant byte address 0x4 - core index']
  #allocation1 [shape = 'u32[144,128]{1,0:T(1,128)}', space=vmem, size = 0x12000, scoped, tag = 'internal scratch']
  #allocation2 [shape = 'f32[32,32]{1,0:T(8,128)}', space=vmem, size = 0x4000, scoped, tag = 'scratch operand']
  #allocation3 [shape = 'f32[16,64]{1,0:T(8,128)}', space=vmem, size = 0x2000, scoped, tag = 'scratch operand']
  %s0 = inlined_call_operand.vmem [shape: f32[32,8], index: 0, kind: input, shape index: {}]
  %s1 = inlined_call_operand.vmem [shape: bf16[24,32], index: 1, kind: input, shape index: {}]
  %s2 = inlined_call_operand.vmem [shape: f32[1,32], index: 2, kind: input, shape index: {}]
  %s3 = inlined_call_operand.vmem [shape: bf16[96,64], index: 3, kind: input, shape index: {}]
  %s4 = inlined_call_operand.vmem [shape: f32[1,64], index: 4, kind: input, shape index: {}]
  %s5 = inlined_call_operand.vmem [shape: bf16[256,128], index: 5, kind: input, shape index: {}]
  %s6 = inlined_call_operand.vmem [shape: f32[1,128], index: 6, kind: input, shape index: {}]
  %s7 = inlined_call_operand.hbm [shape: f32[2,128], index: 7, kind: output, shape index: {}]
  %s8 = sld [smem:[#allocation0]]
  $region38: #{cnn_forward.1} parent=0
    _
  %s10 = ssub.s32 1, %s8
  %s11 = scalar_select 0, %s10, %s8
  $region1: #{cnn_forward.1} parent=0
    #allocation4 [shape = 'u8[1024]{0}', space=vmem, size = 0x400, scoped, tag = 'output window, operand 0, single buffered']
    #allocation5 [shape = 's32[1]{0}', space=sflag, size = 0x4, scoped, tag = 'scoped memory for cnn_forward.1']
    %12 = vsyncpa [#allocation5], 0
    // Predicated region
    $region2: #{cnn_forward.1} parent=1 // pred_check
      _
    $region3: #{cnn_forward.1} parent=1 // pred_check_branch
      %14 = sbr.rel (0) target = $region5
    $region4: #{cnn_forward.1} parent=1 // pred_region
      _
    $region5: #{cnn_forward.1} parent=1 // pred_fallthru
      _
    // Predicated region
    $region6: #{cnn_forward.1} parent=1 // pred_check
      _
    $region7: #{cnn_forward.1} parent=1 // pred_check_branch
      %16 = sbr.rel (0) target = $region9
    $region8: #{cnn_forward.1} parent=1 // pred_region
      _
    $region9: #{cnn_forward.1} parent=1 // pred_fallthru
      _
    // Predicated region
    $region10: #{cnn_forward.1} parent=1 // pred_check
      _
    $region11: #{cnn_forward.1} parent=1 // pred_check_branch
      %18 = sbr.rel (0) target = $region13
    $region12: #{cnn_forward.1} parent=1 // pred_region
      _
    $region13: #{cnn_forward.1} parent=1 // pred_fallthru
      _
    // Predicated region
    $region14: #{cnn_forward.1} parent=1 // pred_check
      _
    $region15: #{cnn_forward.1} parent=1 // pred_check_branch
      %20 = sbr.rel (0) target = $region17
    $region16: #{cnn_forward.1} parent=1 // pred_region
      _
    $region17: #{cnn_forward.1} parent=1 // pred_fallthru
      _
    // Predicated region
    $region18: #{cnn_forward.1} parent=1 // pred_check
      _
    $region19: #{cnn_forward.1} parent=1 // pred_check_branch
      %22 = sbr.rel (0) target = $region21
    $region20: #{cnn_forward.1} parent=1 // pred_region
      _
    $region21: #{cnn_forward.1} parent=1 // pred_fallthru
      _
    // Predicated region
    $region22: #{cnn_forward.1} parent=1 // pred_check
      _
    $region23: #{cnn_forward.1} parent=1 // pred_check_branch
      %24 = sbr.rel (0) target = $region25
    $region24: #{cnn_forward.1} parent=1 // pred_region
      _
    $region25: #{cnn_forward.1} parent=1 // pred_fallthru
      _
    // Predicated region
    $region26: #{cnn_forward.1} parent=1 // pred_check
      _
    $region27: #{cnn_forward.1} parent=1 // pred_check_branch
      %26 = sbr.rel (0) target = $region29
    $region28: #{cnn_forward.1} parent=1 // pred_region
      _
    $region29: #{cnn_forward.1} parent=1 // pred_fallthru
      _
    %v28 = vld [vmem:[%s0] sm:$0xff]
    %v29 = vld [vmem:[%s0 + $0x8] sm:$0xff]
    %v30 = vld [vmem:[%s0 + $0x10] sm:$0xff]
    %v31 = vld [vmem:[%s0 + $0x18] sm:$0xff]
    %v32 = vlaneseq
    %v33 = vshrl.u32 %v32, 7
    %v34 = vadd.s32 %v33, 8
    %v35 = vadd.s32 %v33, 16
    %v36 = vadd.s32 %v33, 24
    %vm37 = vcmp.lt.s32.totalorder %v33, 0
    %v38 = vsub.s32 0, %v33
    %v39 = vsel %vm37, %v38, %v33
    %v40 = vshrl.u32 %v39, 4
    %v41 = vand.u32 %v39, 15
    %v42 = vsub.s32 0, %v41
    %v43 = vsel %vm37, %v42, %v41
    %vm44 = vcmp.lt.s32.totalorder %v34, 0
    %v45 = vsub.s32 0, %v34
    %v46 = vsel %vm44, %v45, %v34
    %v47 = vshrl.u32 %v46, 4
    %v48 = vand.u32 %v46, 15
    %v49 = vsub.s32 0, %v48
    %v50 = vsel %vm44, %v49, %v48
    %vm51 = vcmp.lt.s32.totalorder %v35, 0
    %v52 = vsub.s32 0, %v35
    %v53 = vsel %vm51, %v52, %v35
    %v54 = vshrl.u32 %v53, 4
    %v55 = vand.u32 %v53, 15
    %v56 = vsub.s32 0, %v55
    %v57 = vsel %vm51, %v56, %v55
    %vm58 = vcmp.lt.s32.totalorder %v36, 0
    %v59 = vsub.s32 0, %v36
    %v60 = vsel %vm58, %v59, %v36
    %v61 = vshrl.u32 %v60, 4
    %v62 = vand.u32 %v60, 15
    %v63 = vsub.s32 0, %v62
    %v64 = vsel %vm58, %v63, %v62
    %vm65 = vcmp.ne.s32.totalorder %v43, 0
    %vm66 = vcmp.ne.s32.totalorder %v50, 0
    %vm67 = vcmp.ne.s32.totalorder %v57, 0
    %vm68 = vcmp.ne.s32.totalorder %v64, 0
    %vm69 = vcmp.lt.s32.totalorder %v43, 0
    %vm70 = vcmp.lt.s32.totalorder %v50, 0
    %vm71 = vcmp.lt.s32.totalorder %v57, 0
    %vm72 = vcmp.lt.s32.totalorder %v64, 0
    %vm73 = vmand %vm69, %vm65
    %vm74 = vmand %vm70, %vm66
    %vm75 = vmand %vm71, %vm67
    %vm76 = vmand %vm72, %vm68
    %v77 = vadd.s32 %v43, 16
    %v78 = vadd.s32 %v50, 16
    %v79 = vadd.s32 %v57, 16
    %v80 = vadd.s32 %v64, 16
    %v81 = vsel %vm73, %v77, %v43
    %v82 = vsel %vm74, %v78, %v50
    %v83 = vsel %vm75, %v79, %v57
    %v84 = vsel %vm76, %v80, %v64
    %vm85 = vcmp.eq.s32.totalorder %v81, 0
    %vm86 = vcmp.eq.s32.totalorder %v82, 0
    %vm87 = vcmp.eq.s32.totalorder %v83, 0
    %vm88 = vcmp.eq.s32.totalorder %v84, 0
    %v89 = vrot.slane %v28, 7
    %v90 = vrot.slane %v29, 7
    %v91 = vrot.slane %v30, 7
    %v92 = vrot.slane %v31, 7
    %vm93 = vcmp.lt.s32.totalorder %v33, 1
    %v94 = vsel %vm93, %v91, %v92
    %v95 = vsel %vm93, %v90, %v91
    %v96 = vsel %vm93, %v89, %v90
    %v97 = vsel %vm93, %v92, %v89
    %v98 = vsel %vm85, 1, 0
    %v99 = vsel %vm86, 1, 0
    %v100 = vsel %vm87, 1, 0
    %v101 = vsel %vm88, 1, 0
    %vm102 = vcmp.eq.s32.totalorder %v98, 1
    %vm103 = vcmp.eq.s32.totalorder %v99, 1
    %vm104 = vcmp.eq.s32.totalorder %v100, 1
    %vm105 = vcmp.eq.s32.totalorder %v101, 1
    %v106 = vsel %vm102, 0.0, %v97
    %v107 = vsel %vm103, 0.0, %v96
    %v108 = vsel %vm104, 0.0, %v95
    %v109 = vsel %vm105, 0.0, %v94
    %vm110 = vcmp.eq.s32.totalorder %v81, 15
    %vm111 = vcmp.eq.s32.totalorder %v82, 15
    %vm112 = vcmp.eq.s32.totalorder %v83, 15
    %vm113 = vcmp.eq.s32.totalorder %v84, 15
    %v114 = vrot.slane %v28, 1
    %v115 = vrot.slane %v29, 1
    %v116 = vrot.slane %v30, 1
    %v117 = vrot.slane %v31, 1
    %vm118 = vcmp.lt.s32.totalorder %v33, 7
    %v119 = vsel %vm118, %v116, %v117
    %v120 = vsel %vm118, %v115, %v116
    %v121 = vsel %vm118, %v114, %v115
    %v122 = vsel %vm118, %v117, %v114
    %v123 = vsel %vm110, 1, 0
    %v124 = vsel %vm111, 1, 0
    %v125 = vsel %vm112, 1, 0
    %v126 = vsel %vm113, 1, 0
    %vm127 = vcmp.eq.s32.totalorder %v123, 1
    %vm128 = vcmp.eq.s32.totalorder %v124, 1
    %vm129 = vcmp.eq.s32.totalorder %v125, 1
    %vm130 = vcmp.eq.s32.totalorder %v126, 1
    %v131 = vsel %vm127, 0.0, %v121
    %v132 = vsel %vm128, 0.0, %v120
    %v133 = vsel %vm129, 0.0, %v119
    %v134 = vsel %vm130, 0.0, %v122
    %139 = vrot.lane.b32.xlu0 %v28, 8
    %v140 = vpop.permute.xlu0 %139
    %141 = vrot.lane.b32.xlu0 %v29, 8
    %v142 = vpop.permute.xlu0 %141
    %143 = vrot.lane.b32.xlu0 %v30, 8
    %v144 = vpop.permute.xlu0 %143
    %145 = vrot.lane.b32.xlu0 %v31, 8
    %v146 = vpop.permute.xlu0 %145
    %155 = vrot.lane.b32.xlu0 %v131, 16
    %v156 = vpop.permute.xlu0 %155
    %157 = vrot.lane.b32.xlu0 %v132, 16
    %v158 = vpop.permute.xlu0 %157
    %159 = vrot.lane.b32.xlu0 %v133, 16
    %v160 = vpop.permute.xlu0 %159
    %161 = vrot.lane.b32.xlu0 %v134, 16
    %v162 = vpop.permute.xlu0 %161
    %vm167 = vcmask 64512
    %v168 = vsel %vm167, %v106, %v140
    %v169 = vsel %vm167, %v107, %v142
    %v170 = vsel %vm167, %v108, %v144
    %v171 = vsel %vm167, %v109, %v146
    %vm172 = vcmask 130048
    %v173 = vsel %vm172, %v168, %v156
    %v174 = vsel %vm172, %v169, %v158
    %v175 = vsel %vm172, %v170, %v160
    %v176 = vsel %vm172, %v171, %v162
    %v177 = vpack.c.bf16 %v174, %v173
    %v178 = vpack.c.bf16 %v176, %v175
    %v179 = vld [vmem:[%s1] sm:$0xf]
    %v180 = vld [vmem:[%s1 + $0x4] sm:$0xf]
    %v181 = vld [vmem:[%s1 + $0x8] sm:$0xf]
    %v182 = vld [vmem:[%s2] sm:$0x1]
    %v184 = vlaneseq
    %v185 = vshrl.u32 %v184, 7
    %v186 = vsub.s32 0, %v185
    %v187 = vrot.slane %v182, %v186
    %v192 = vunpack.c.l.b16 %v179
    %v193 = vunpack.c.l.b16 %v180
    %v194 = vunpack.c.l.b16 %v181
    %v195 = vpack.c.b16 %v193, %v192
    %v196 = vpack.c.b16 %v194, %v194
    %vm198 = vcmask 195584
    %v200 = vsel %vm198, %v177, 0
    %v203 = vsel %vm198, %v178, 0
    %vm205 = vcmask 1043456
    %v207 = vsel %vm205, %v196, 0
    %209 = vmatprep.subr.bf16.mxu0 0
    %210 = vmatpush1.bf16.msra.mxu0 %v195
    %211 = vmatprep.subr.bf16.mxu0 0
    %212 = vmatpush1.bf16.msra.mxu0 %v207
    %213 = vmatprep.subr.bf16.mxu0 0
    %214 = vmatpush1.bf16.msra.mxu0 0
    %215 = vmatprep.subr.bf16.mxu0 0
    %216 = vmatpush1.bf16.msra.mxu0 0
    %217 = vmatprep.subr.bf16.mxu0 0
    %218 = vmatpush1.bf16.msra.mxu0 0
    %219 = vmatprep.subr.bf16.mxu0 0
    %220 = vmatpush1.bf16.msra.mxu0 0
    %221 = vmatprep.subr.bf16.mxu0 0
    %222 = vmatpush1.bf16.msra.mxu0 0
    %223 = vmatprep.subr.bf16.mxu0 0
    %224 = vmatpush1.bf16.msra.mxu0 0
    %225 = vmatprep.subr.bf16.mxu0 0
    %226 = vmatpush1.bf16.msra.mxu0 0
    %227 = vmatprep.subr.bf16.mxu0 0
    %228 = vmatpush1.bf16.msra.mxu0 0
    %229 = vmatprep.subr.bf16.mxu0 0
    %230 = vmatpush1.bf16.msra.mxu0 0
    %231 = vmatprep.subr.bf16.mxu0 0
    %232 = vmatpush1.bf16.msra.mxu0 0
    %233 = vmatprep.subr.bf16.mxu0 0
    %234 = vmatpush1.bf16.msra.mxu0 0
    %235 = vmatprep.subr.bf16.mxu0 0
    %236 = vmatpush1.bf16.msra.mxu0 0
    %237 = vmatprep.subr.bf16.mxu0 0
    %238 = vmatpush1.bf16.msra.mxu0 0
    %239 = vmatprep.subr.bf16.mxu0 0
    %240 = vmatpush1.bf16.msra.mxu0 0
    %241 = vmatprep.mubr.bf16.mxu0 0
    %242 = vmatmul.mubr.bf16.gmra.mrb[0].mxu0 %v200
    %v243 = vpop.f32.mrb[0].mxu0
    %v244 = vadd.f32 %v187, %v243
    %v245 = vpop.f32.mrb[0].mxu0
    %v246 = vpop.f32.mrb[0].mxu0
    %v247 = vadd.f32 %v187, %v246
    %v248 = vpop.f32.mrb[0].mxu0
    %249 = vmatprep.mubr.bf16.mxu0 0
    %250 = vmatmul.mubr.bf16.gmra.mrb[0].mxu0 %v203
    %v251 = vpop.f32.mrb[0].mxu0
    %v252 = vadd.f32 %v187, %v251
    %v253 = vpop.f32.mrb[0].mxu0
    %v254 = vpop.f32.mrb[0].mxu0
    %v255 = vadd.f32 %v187, %v254
    %v256 = vpop.f32.mrb[0].mxu0
    %257 = vdwg.mxu0
    %v258 = vmax.f32 %v244, 0.0
    %v259 = vmax.f32 %v247, 0.0
    %v260 = vmax.f32 %v252, 0.0
    %v261 = vmax.f32 %v255, 0.0
    %vm262 = vcmask 261120
    %263 = vst.msk [vmem:[#allocation2] sm:$0xff] %vm262, %v258
    %264 = vst.msk [vmem:[#allocation2 + $0x8] sm:$0xff] %vm262, %v259
    %265 = vst.msk [vmem:[#allocation2 + $0x10] sm:$0xff] %vm262, %v260
    %266 = vst.msk [vmem:[#allocation2 + $0x18] sm:$0xff] %vm262, %v261
    %v267 = vld [vmem:[#allocation2] ss:$2 sm:$0xff]
    %s268 = scalar_lea.vmem [#allocation2], 16
    %v269 = vld [vmem:[%s268] ss:$2 sm:$0xff]
    %s270 = scalar_lea.vmem [#allocation2], 1
    %v271 = vld [vmem:[%s270] ss:$2 sm:$0xff]
    %s272 = scalar_lea.vmem [#allocation2], 17
    %v273 = vld [vmem:[%s272] ss:$2 sm:$0xff]
    %v274 = vmax.f32 %v267, %v271
    %v275 = vmax.f32 %v269, %v273
    %vm276 = vcmp.lt.s32.totalorder %v33, 0
    %v277 = vsub.s32 0, %v33
    %v278 = vsel %vm276, %v277, %v33
    %v279 = vshrl.u32 %v278, 3
    %v280 = vand.u32 %v278, 7
    %v281 = vsub.s32 0, %v280
    %v282 = vsel %vm276, %v281, %v280
    %vm283 = vcmp.lt.s32.totalorder %v34, 0
    %v284 = vsub.s32 0, %v34
    %v285 = vsel %vm283, %v284, %v34
    %v286 = vshrl.u32 %v285, 3
    %v287 = vand.u32 %v285, 7
    %v288 = vsub.s32 0, %v287
    %v289 = vsel %vm283, %v288, %v287
    %vm290 = vcmp.ne.s32.totalorder %v282, 0
    %vm291 = vcmp.ne.s32.totalorder %v289, 0
    %vm292 = vcmp.lt.s32.totalorder %v282, 0
    %vm293 = vcmp.lt.s32.totalorder %v289, 0
    %vm294 = vmand %vm292, %vm290
    %vm295 = vmand %vm293, %vm291
    %v296 = vadd.s32 %v282, 8
    %v297 = vadd.s32 %v289, 8
    %v298 = vsel %vm294, %v296, %v282
    %v299 = vsel %vm295, %v297, %v289
    %vm300 = vcmp.eq.s32.totalorder %v298, 0
    %vm301 = vcmp.eq.s32.totalorder %v299, 0
    %v302 = vrot.slane %v274, 7
    %v303 = vrot.slane %v275, 7
    %v304 = vsel %vm93, %v302, %v303
    %v305 = vsel %vm93, %v303, %v302
    %v306 = vsel %vm300, 1, 0
    %v307 = vsel %vm301, 1, 0
    %vm308 = vcmp.eq.s32.totalorder %v306, 1
    %vm309 = vcmp.eq.s32.totalorder %v307, 1
    %v310 = vsel %vm308, 0.0, %v305
    %v311 = vsel %vm309, 0.0, %v304
    %vm312 = vcmp.eq.s32.totalorder %v298, 7
    %vm313 = vcmp.eq.s32.totalorder %v299, 7
    %v314 = vrot.slane %v274, 1
    %v315 = vrot.slane %v275, 1
    %v316 = vsel %vm118, %v314, %v315
    %v317 = vsel %vm118, %v315, %v314
    %v318 = vsel %vm312, 1, 0
    %v319 = vsel %vm313, 1, 0
    %vm320 = vcmp.eq.s32.totalorder %v318, 1
    %vm321 = vcmp.eq.s32.totalorder %v319, 1
    %v322 = vsel %vm320, 0.0, %v316
    %v323 = vsel %vm321, 0.0, %v317
    %326 = vrot.lane.b32.xlu0 %v274, 32
    %v327 = vpop.permute.xlu0 %326
    %328 = vrot.lane.b32.xlu0 %v275, 32
    %v329 = vpop.permute.xlu0 %328
    %334 = vrot.lane.b32.xlu0 %v322, 64
    %v335 = vpop.permute.xlu0 %334
    %336 = vrot.lane.b32.xlu0 %v323, 64
    %v337 = vpop.permute.xlu0 %336
    %v340 = vsel %vm262, %v310, %v327
    %v341 = vsel %vm262, %v311, %v329
    %vm342 = vcmask 523264
    %v343 = vsel %vm342, %v340, %v335
    %v344 = vsel %vm342, %v341, %v337
    %v345 = vpack.c.bf16 %v344, %v343
    %v346 = vld [vmem:[%s3] sm:$0xf]
    %v347 = vld [vmem:[%s3 + $0x4] sm:$0xf]
    %v348 = vld [vmem:[%s3 + $0x8] sm:$0xf]
    %v349 = vld [vmem:[%s3 + $0xc] sm:$0xf]
    %v350 = vld [vmem:[%s3 + $0x10] sm:$0xf]
    %v351 = vld [vmem:[%s3 + $0x14] sm:$0xf]
    %v352 = vld [vmem:[%s3 + $0x18] sm:$0xf]
    %v353 = vld [vmem:[%s3 + $0x1c] sm:$0xf]
    %v354 = vld [vmem:[%s3 + $0x20] sm:$0xf]
    %v355 = vld [vmem:[%s3 + $0x24] sm:$0xf]
    %v356 = vld [vmem:[%s3 + $0x28] sm:$0xf]
    %v357 = vld [vmem:[%s3 + $0x2c] sm:$0xf]
    %v358 = vld [vmem:[%s4] sm:$0x1]
    %v360 = vlaneseq
    %v361 = vshrl.u32 %v360, 7
    %v362 = vsub.s32 0, %v361
    %v363 = vrot.slane %v358, %v362
    %v377 = vunpack.c.l.b16 %v346
    %v378 = vunpack.c.l.b16 %v347
    %v379 = vunpack.c.l.b16 %v348
    %v380 = vunpack.c.l.b16 %v349
    %v381 = vunpack.c.l.b16 %v350
    %v382 = vunpack.c.l.b16 %v351
    %v383 = vunpack.c.l.b16 %v352
    %v384 = vunpack.c.l.b16 %v353
    %v385 = vunpack.c.l.b16 %v354
    %v386 = vunpack.c.l.b16 %v355
    %v387 = vunpack.c.l.b16 %v356
    %v388 = vunpack.c.l.b16 %v357
    %v389 = vpack.c.b16 %v378, %v377
    %v390 = vpack.c.b16 %v380, %v379
    %v391 = vpack.c.b16 %v382, %v381
    %v392 = vpack.c.b16 %v384, %v383
    %v393 = vpack.c.b16 %v386, %v385
    %v394 = vpack.c.b16 %v388, %v387
    %vm401 = vcmask 785408
    %v403 = vsel %vm401, %v345, 0
    %405 = vmatprep.subr.bf16.mxu0 0
    %406 = vmatpush1.bf16.msra.mxu0 %v389
    %407 = vmatprep.subr.bf16.mxu0 0
    %408 = vmatpush1.bf16.msra.mxu0 %v390
    %409 = vmatprep.subr.bf16.mxu0 0
    %410 = vmatpush1.bf16.msra.mxu0 %v391
    %411 = vmatprep.subr.bf16.mxu0 0
    %412 = vmatpush1.bf16.msra.mxu0 %v392
    %413 = vmatprep.subr.bf16.mxu0 0
    %414 = vmatpush1.bf16.msra.mxu0 %v393
    %415 = vmatprep.subr.bf16.mxu0 0
    %416 = vmatpush1.bf16.msra.mxu0 %v394
    %417 = vmatprep.subr.bf16.mxu0 0
    %418 = vmatpush1.bf16.msra.mxu0 0
    %419 = vmatprep.subr.bf16.mxu0 0
    %420 = vmatpush1.bf16.msra.mxu0 0
    %421 = vmatprep.subr.bf16.mxu0 0
    %422 = vmatpush1.bf16.msra.mxu0 0
    %423 = vmatprep.subr.bf16.mxu0 0
    %424 = vmatpush1.bf16.msra.mxu0 0
    %425 = vmatprep.subr.bf16.mxu0 0
    %426 = vmatpush1.bf16.msra.mxu0 0
    %427 = vmatprep.subr.bf16.mxu0 0
    %428 = vmatpush1.bf16.msra.mxu0 0
    %429 = vmatprep.subr.bf16.mxu0 0
    %430 = vmatpush1.bf16.msra.mxu0 0
    %431 = vmatprep.subr.bf16.mxu0 0
    %432 = vmatpush1.bf16.msra.mxu0 0
    %433 = vmatprep.subr.bf16.mxu0 0
    %434 = vmatpush1.bf16.msra.mxu0 0
    %435 = vmatprep.subr.bf16.mxu0 0
    %436 = vmatpush1.bf16.msra.mxu0 0
    %437 = vmatprep.mubr.bf16.mxu0 0
    %438 = vmatmul.mubr.bf16.gmra.mrb[0].mxu0 %v403
    %v439 = vpop.f32.mrb[0].mxu0
    %v440 = vadd.f32 %v363, %v439
    %v441 = vpop.f32.mrb[0].mxu0
    %v442 = vpop.f32.mrb[0].mxu0
    %v443 = vadd.f32 %v363, %v442
    %v444 = vpop.f32.mrb[0].mxu0
    %445 = vdwg.mxu0
    %v446 = vmax.f32 %v440, 0.0
    %v447 = vmax.f32 %v443, 0.0
    %448 = vst.msk [vmem:[#allocation3] sm:$0xff] %vm342, %v446
    %449 = vst.msk [vmem:[#allocation3 + $0x8] sm:$0xff] %vm342, %v447
    %v450 = vld [vmem:[#allocation3] ss:$8 sm:$0x3]
    %s451 = scalar_lea.vmem [#allocation3], 1
    %v452 = vld [vmem:[%s451] ss:$8 sm:$0x3]
    %v453 = vmax.f32 %v450, %v452
    %s454 = scalar_lea.vmem [#allocation3], 2
    %v455 = vld [vmem:[%s454] ss:$8 sm:$0x3]
    %s456 = scalar_lea.vmem [#allocation3], 3
    %v457 = vld [vmem:[%s456] ss:$8 sm:$0x3]
    %v458 = vmax.f32 %v455, %v457
    %s459 = scalar_lea.vmem [#allocation3], 4
    %v460 = vld [vmem:[%s459] ss:$8 sm:$0x3]
    %s461 = scalar_lea.vmem [#allocation3], 5
    %v462 = vld [vmem:[%s461] ss:$8 sm:$0x3]
    %v463 = vmax.f32 %v460, %v462
    %s464 = scalar_lea.vmem [#allocation3], 6
    %v465 = vld [vmem:[%s464] ss:$8 sm:$0x3]
    %s466 = scalar_lea.vmem [#allocation3], 7
    %v467 = vld [vmem:[%s466] ss:$8 sm:$0x3]
    %v468 = vmax.f32 %v465, %v467
    %470 = vrot.lane.b32.xlu0 %v458, 64
    %v471 = vpop.permute.xlu0 %470
    %474 = vrot.lane.b32.xlu0 %v468, 64
    %v475 = vpop.permute.xlu0 %474
    %v477 = vsel %vm342, %v453, %v471
    %v478 = vsel %vm342, %v463, %v475
    %v479 = vpack.c.bf16 %v477, %v477
    %v480 = vpack.c.bf16 %v478, %v478
    %v481 = vld [vmem:[%s5] sm:$0xf]
    %v482 = vld [vmem:[%s5 + $0x4] sm:$0xf]
    %v483 = vld [vmem:[%s5 + $0x8] sm:$0xf]
    %v484 = vld [vmem:[%s5 + $0xc] sm:$0xf]
    %v485 = vld [vmem:[%s5 + $0x10] sm:$0xf]
    %v486 = vld [vmem:[%s5 + $0x14] sm:$0xf]
    %v487 = vld [vmem:[%s5 + $0x18] sm:$0xf]
    %v488 = vld [vmem:[%s5 + $0x1c] sm:$0xf]
    %v489 = vld [vmem:[%s5 + $0x20] sm:$0xf]
    %v490 = vld [vmem:[%s5 + $0x24] sm:$0xf]
    %v491 = vld [vmem:[%s5 + $0x28] sm:$0xf]
    %v492 = vld [vmem:[%s5 + $0x2c] sm:$0xf]
    %v493 = vld [vmem:[%s5 + $0x30] sm:$0xf]
    %v494 = vld [vmem:[%s5 + $0x34] sm:$0xf]
    %v495 = vld [vmem:[%s5 + $0x38] sm:$0xf]
    %v496 = vld [vmem:[%s5 + $0x3c] sm:$0xf]
    %v497 = vld [vmem:[%s5 + $0x40] sm:$0xf]
    %v498 = vld [vmem:[%s5 + $0x44] sm:$0xf]
    %v499 = vld [vmem:[%s5 + $0x48] sm:$0xf]
    %v500 = vld [vmem:[%s5 + $0x4c] sm:$0xf]
    %v501 = vld [vmem:[%s5 + $0x50] sm:$0xf]
    %v502 = vld [vmem:[%s5 + $0x54] sm:$0xf]
    %v503 = vld [vmem:[%s5 + $0x58] sm:$0xf]
    %v504 = vld [vmem:[%s5 + $0x5c] sm:$0xf]
    %v505 = vld [vmem:[%s5 + $0x60] sm:$0xf]
    %v506 = vld [vmem:[%s5 + $0x64] sm:$0xf]
    %v507 = vld [vmem:[%s5 + $0x68] sm:$0xf]
    %v508 = vld [vmem:[%s5 + $0x6c] sm:$0xf]
    %v509 = vld [vmem:[%s5 + $0x70] sm:$0xf]
    %v510 = vld [vmem:[%s5 + $0x74] sm:$0xf]
    %v511 = vld [vmem:[%s5 + $0x78] sm:$0xf]
    %v512 = vld [vmem:[%s5 + $0x7c] sm:$0xf]
    %v513 = vld [vmem:[%s6] sm:$0x1]
    %v515 = vlaneseq
    %v516 = vshrl.u32 %v515, 7
    %v517 = vsub.s32 0, %v516
    %v518 = vrot.slane %v513, %v517
    %v552 = vunpack.c.l.b16 %v481
    %v553 = vunpack.c.l.b16 %v482
    %v554 = vunpack.c.l.b16 %v483
    %v555 = vunpack.c.l.b16 %v484
    %v556 = vunpack.c.l.b16 %v485
    %v557 = vunpack.c.l.b16 %v486
    %v558 = vunpack.c.l.b16 %v487
    %v559 = vunpack.c.l.b16 %v488
    %v560 = vunpack.c.l.b16 %v489
    %v561 = vunpack.c.l.b16 %v490
    %v562 = vunpack.c.l.b16 %v491
    %v563 = vunpack.c.l.b16 %v492
    %v564 = vunpack.c.l.b16 %v493
    %v565 = vunpack.c.l.b16 %v494
    %v566 = vunpack.c.l.b16 %v495
    %v567 = vunpack.c.l.b16 %v496
    %v568 = vunpack.c.l.b16 %v497
    %v569 = vunpack.c.l.b16 %v498
    %v570 = vunpack.c.l.b16 %v499
    %v571 = vunpack.c.l.b16 %v500
    %v572 = vunpack.c.l.b16 %v501
    %v573 = vunpack.c.l.b16 %v502
    %v574 = vunpack.c.l.b16 %v503
    %v575 = vunpack.c.l.b16 %v504
    %v576 = vunpack.c.l.b16 %v505
    %v577 = vunpack.c.l.b16 %v506
    %v578 = vunpack.c.l.b16 %v507
    %v579 = vunpack.c.l.b16 %v508
    %v580 = vunpack.c.l.b16 %v509
    %v581 = vunpack.c.l.b16 %v510
    %v582 = vunpack.c.l.b16 %v511
    %v583 = vunpack.c.l.b16 %v512
    %v584 = vpack.c.b16 %v553, %v552
    %v585 = vpack.c.b16 %v555, %v554
    %v586 = vpack.c.b16 %v557, %v556
    %v587 = vpack.c.b16 %v559, %v558
    %v588 = vpack.c.b16 %v561, %v560
    %v589 = vpack.c.b16 %v563, %v562
    %v590 = vpack.c.b16 %v565, %v564
    %v591 = vpack.c.b16 %v567, %v566
    %v592 = vpack.c.b16 %v569, %v568
    %v593 = vpack.c.b16 %v571, %v570
    %v594 = vpack.c.b16 %v573, %v572
    %v595 = vpack.c.b16 %v575, %v574
    %v596 = vpack.c.b16 %v577, %v576
    %v597 = vpack.c.b16 %v579, %v578
    %v598 = vpack.c.b16 %v581, %v580
    %v599 = vpack.c.b16 %v583, %v582
    %616 = vmatprep.subr.bf16.mxu0 0
    %617 = vmatpush1.bf16.msra.mxu0 %v584
    %618 = vmatprep.subr.bf16.mxu0 0
    %619 = vmatpush1.bf16.msra.mxu0 %v585
    %620 = vmatprep.subr.bf16.mxu0 0
    %621 = vmatpush1.bf16.msra.mxu0 %v586
    %622 = vmatprep.subr.bf16.mxu0 0
    %623 = vmatpush1.bf16.msra.mxu0 %v587
    %624 = vmatprep.subr.bf16.mxu0 0
    %625 = vmatpush1.bf16.msra.mxu0 %v588
    %626 = vmatprep.subr.bf16.mxu0 0
    %627 = vmatpush1.bf16.msra.mxu0 %v589
    %628 = vmatprep.subr.bf16.mxu0 0
    %629 = vmatpush1.bf16.msra.mxu0 %v590
    %630 = vmatprep.subr.bf16.mxu0 0
    %631 = vmatpush1.bf16.msra.mxu0 %v591
    %632 = vmatprep.subr.bf16.mxu0 0
    %633 = vmatpush1.bf16.msra.mxu0 %v592
    %634 = vmatprep.subr.bf16.mxu0 0
    %635 = vmatpush1.bf16.msra.mxu0 %v593
    %636 = vmatprep.subr.bf16.mxu0 0
    %637 = vmatpush1.bf16.msra.mxu0 %v594
    %638 = vmatprep.subr.bf16.mxu0 0
    %639 = vmatpush1.bf16.msra.mxu0 %v595
    %640 = vmatprep.subr.bf16.mxu0 0
    %641 = vmatpush1.bf16.msra.mxu0 %v596
    %642 = vmatprep.subr.bf16.mxu0 0
    %643 = vmatpush1.bf16.msra.mxu0 %v597
    %644 = vmatprep.subr.bf16.mxu0 0
    %645 = vmatpush1.bf16.msra.mxu0 %v598
    %646 = vmatprep.subr.bf16.mxu0 0
    %647 = vmatpush1.bf16.msra.mxu0 %v599
    %648 = vmatprep.mubr.bf16.mxu0 %v480
    %649 = vmatmul.mubr.bf16.gmra.mrb[0].mxu0 %v479
    %v650 = vpop.f32.mrb[0].mxu0
    %v651 = vadd.f32 %v518, %v650
    %v652 = vpop.f32.mrb[0].mxu0
    %v653 = vpop.f32.mrb[0].mxu0
    %v654 = vpop.f32.mrb[0].mxu0
    %655 = vdwg.mxu0
    %656 = vst [vmem:[#allocation4] sm:$0x3] %v651
    // Predicated region
    $region30: #{cnn_forward.1} parent=1 // pred_check
      _
    $region31: #{cnn_forward.1} parent=1 // pred_check_branch
      %658 = sbr.rel (0) target = $region33
    $region32: #{cnn_forward.1} parent=1 // pred_region
      %s660 = ssub.s32 32, 32
      %661 = vsyncadd [#allocation5], %s660
      %s663 = sshll.u32 [#allocation4], 4
      %s664 = int_to_ptr.vmem [resolvable:$true] %s663
      %666 = dma.vmem_to_hbm [thread:$0]  %s664, 32, %s7, [#allocation5]
    $region33: #{cnn_forward.1} parent=1 // pred_fallthru
      _
    // Predicated region
    $region34: #{cnn_forward.1} parent=1 // pred_check
      _
    $region35: #{cnn_forward.1} parent=1 // pred_check_branch
      %668 = sbr.rel (0) target = $region37
    $region36: #{cnn_forward.1} parent=1 // pred_region
      %669 = dma.done [#allocation5], 32
    $region37: #{cnn_forward.1} parent=1 // pred_fallthru
      _
    %670 = vsyncpa [#allocation5], 1

</llo_original>
